<compile_context>
chip_gen: v5e
topology: v5e:2x2
jax: 0.10.0
libtpu: 0.0.40
codegen_flags: <defaults>
</compile_context>

<pallas_src>
import functools

import jax
import jax.numpy as jnp
from jax.experimental import pallas as pl
from jax.experimental.pallas import tpu as pltpu


def _fused_mlp_kernel(*refs):
    """refs = (x_ref, w_ref_0, ..., w_ref_{K-1}, o_ref).

    x_ref:   (C0, TL) token tile — channels on sublanes, tokens on lanes.
    w_ref_i: (C_{i+1}, C_i) full weight, resident in VMEM.
    o_ref:   (C_K, TL).
    """
    x_ref = refs[0]
    o_ref = refs[-1]
    w_refs = refs[1:-1]
    h = x_ref[...].astype(jnp.float32)
    for w_ref in w_refs:
        # 1x1 conv == channel matmul; ReLU after every layer (incl. the last).
        h = jnp.maximum(
            jnp.dot(w_ref[...], h, preferred_element_type=jnp.float32), 0.0)
    o_ref[...] = h.astype(o_ref.dtype)


def _choose_token_tile(L, tl_max):
    """Pick a lane-dense token tile (multiple of 128) and the padded L."""
    if L <= 128:
        return L, L                       # single block == full axis, no pad
    tl = min(tl_max, L)
    tl = max(128, (tl // 128) * 128)      # keep lane-dense
    L_pad = -(-L // tl) * tl
    return tl, L_pad


@functools.partial(jax.jit, static_argnames=("tl_max",))
def mlp_forward(x_ncl, weights, *, tl_max=512):
    """x_ncl: (N, C0, L) channels-first, like the PyTorch module."""
    if not weights:                       # ch_list shorter than 2 -> identity
        return x_ncl

    N, C0, L = x_ncl.shape
    c_last = weights[-1].shape[0]
    tl, L_pad = _choose_token_tile(L, tl_max)
    x_p = x_ncl if L_pad == L else jnp.pad(
        x_ncl, ((0, 0), (0, 0), (0, L_pad - L)))

    in_specs = [
        # Token tile: batch dim squeezed, channels x tokens inside the kernel.
        pl.BlockSpec((None, C0, tl), lambda n, j: (n, 0, j)),
    ]
    for w in weights:
        co, ci = w.shape
        # Full (tiny) weight; same block index every step -> stays resident.
        in_specs.append(pl.BlockSpec((co, ci), lambda n, j: (0, 0)))
    out_spec = pl.BlockSpec((None, c_last, tl), lambda n, j: (n, 0, j))

    out = pl.pallas_call(
        _fused_mlp_kernel,
        out_shape=jax.ShapeDtypeStruct((N, c_last, L_pad), x_ncl.dtype),
        grid_spec=pltpu.PrefetchScalarGridSpec(
            num_scalar_prefetch=0,
            grid=(N, L_pad // tl),
            in_specs=in_specs,
            out_specs=out_spec,
        ),
        compiler_params=pltpu.CompilerParams(
            # Independent token tiles on both axes -> megacore sharding on v7x.
            dimension_semantics=("parallel", "parallel"),
            # Budget: 2 bufs x (C0 + C_last) x tl x 4B + weights << 1 MiB at
            # tl=512; 32 MiB leaves ample headroom and is safe on v7x (64 MiB).
            vmem_limit_bytes=32 * 1024 * 1024,
        ),
    )(x_p, *weights)

    return out if L_pad == L else out[:, :, :L]


def init_mlp_params(key, ch_list, dtype=jnp.float32):
    """Deterministic weights; Conv1d(k=1, bias=False) weight (Cout, Cin, 1) -> (Cout, Cin)."""
    weights = []
    for i in range(len(ch_list) - 1):
        key, sub = jax.random.split(key)
        c_in, c_out = ch_list[i], ch_list[i + 1]
        bound = 1.0 / jnp.sqrt(c_in)  # matches PyTorch conv default init range
        w = jax.random.uniform(sub, (c_out, c_in), dtype=dtype,
                               minval=-bound, maxval=bound)
        weights.append(w)
    return weights


def mlp_reference(x_ncl, weights):
    """Pure-JAX reference with identical semantics."""
    h = x_ncl
    for w in weights:
        h = jnp.einsum("oc,ncl->nol", w, h,
                       precision=jax.lax.Precision.HIGHEST)
        h = jnp.maximum(h, 0.0)
    return h


if __name__ == "__main__":
    key = jax.random.PRNGKey(0)
    ch_list = [4, 8, 16, 8]          # small synthetic MLP
    N, L = 2, 16                     # batch=2, seq length=16 -> 32 tokens

    k_x, k_w = jax.random.split(key)
    x = jax.random.normal(k_x, (N, ch_list[0], L), dtype=jnp.float32)
    weights = init_mlp_params(k_w, ch_list)

    out = mlp_forward(x, weights)
    out = jax.block_until_ready(out)

    ref = mlp_reference(x, weights)
    assert out.shape == (N, ch_list[-1], L)
    assert jnp.allclose(out, ref, atol=1e-5, rtol=1e-5), "mismatch vs reference"

    print("KERNEL_OK")
</pallas_src>

<mosaic_0001>
module attributes {stable_mosaic.version = 11 : i64} {
  func.func @_fused_mlp_kernel(%arg0: i32, %arg1: i32, %arg2: memref<1x4x16xf32, #tpu.memory_space<vmem>>, %arg3: memref<8x4xf32, #tpu.memory_space<vmem>>, %arg4: memref<16x8xf32, #tpu.memory_space<vmem>>, %arg5: memref<8x16xf32, #tpu.memory_space<vmem>>, %arg6: memref<1x8x16xf32, #tpu.memory_space<vmem>>) attributes {dimension_semantics = [#tpu.dimension_semantics<parallel>, #tpu.dimension_semantics<parallel>], iteration_bounds = array<i64: 2, 1>, scalar_prefetch = 0 : i64, scratch_operands = 0 : i64, tpu.core_type = #tpu.core_type<tc>, window_params = [{transform_indices = @transform_0, window_bounds = array<i64: 1, 4, 16>}, {pipeline_mode = #tpu.pipeline_mode<synchronous>, transform_indices = @transform_1, window_bounds = array<i64: 8, 4>}, {pipeline_mode = #tpu.pipeline_mode<synchronous>, transform_indices = @transform_2, window_bounds = array<i64: 16, 8>}, {pipeline_mode = #tpu.pipeline_mode<synchronous>, transform_indices = @transform_3, window_bounds = array<i64: 8, 16>}, {transform_indices = @transform_4, window_bounds = array<i64: 1, 8, 16>}]} {
    %c0 = arith.constant 0 : index
    %c0_0 = arith.constant 0 : index
    %c0_1 = arith.constant 0 : index
    %0 = vector.load %arg2[%c0, %c0_0, %c0_1] : memref<1x4x16xf32, #tpu.memory_space<vmem>>, vector<1x4x16xf32>
    %1 = vector.shape_cast %0 : vector<1x4x16xf32> to vector<4x16xf32>
    %c0_2 = arith.constant 0 : index
    %c0_3 = arith.constant 0 : index
    %2 = vector.load %arg3[%c0_2, %c0_3] : memref<8x4xf32, #tpu.memory_space<vmem>>, vector<8x4xf32>
    %cst = arith.constant dense<0.000000e+00> : vector<8x16xf32>
    %3 = tpu.matmul %2, %1, %cst {dimension_numbers = #tpu.dot_dimension_numbers<[1], [0], [0], [1], [0, 0, 1, 1], [], []>} : vector<8x4xf32>, vector<4x16xf32>, vector<8x16xf32> -> vector<8x16xf32>
    %cst_4 = arith.constant 0.000000e+00 : f32
    %4 = vector.broadcast %cst_4 : f32 to vector<8x16xf32>
    %5 = arith.maximumf %3, %4 : vector<8x16xf32>
    %c0_5 = arith.constant 0 : index
    %c0_6 = arith.constant 0 : index
    %6 = vector.load %arg4[%c0_5, %c0_6] : memref<16x8xf32, #tpu.memory_space<vmem>>, vector<16x8xf32>
    %cst_7 = arith.constant dense<0.000000e+00> : vector<16x16xf32>
    %7 = tpu.matmul %6, %5, %cst_7 {dimension_numbers = #tpu.dot_dimension_numbers<[1], [0], [0], [1], [0, 0, 1, 1], [], []>} : vector<16x8xf32>, vector<8x16xf32>, vector<16x16xf32> -> vector<16x16xf32>
    %cst_8 = arith.constant 0.000000e+00 : f32
    %8 = vector.broadcast %cst_8 : f32 to vector<16x16xf32>
    %9 = arith.maximumf %7, %8 : vector<16x16xf32>
    %c0_9 = arith.constant 0 : index
    %c0_10 = arith.constant 0 : index
    %10 = vector.load %arg5[%c0_9, %c0_10] : memref<8x16xf32, #tpu.memory_space<vmem>>, vector<8x16xf32>
    %cst_11 = arith.constant dense<0.000000e+00> : vector<8x16xf32>
    %11 = tpu.matmul %10, %9, %cst_11 {dimension_numbers = #tpu.dot_dimension_numbers<[1], [0], [0], [1], [0, 0, 1, 1], [], []>} : vector<8x16xf32>, vector<16x16xf32>, vector<8x16xf32> -> vector<8x16xf32>
    %cst_12 = arith.constant 0.000000e+00 : f32
    %12 = vector.broadcast %cst_12 : f32 to vector<8x16xf32>
    %13 = arith.maximumf %11, %12 : vector<8x16xf32>
    %c0_13 = arith.constant 0 : index
    %c0_14 = arith.constant 0 : index
    %c0_15 = arith.constant 0 : index
    %14 = vector.load %arg6[%c0_13, %c0_14, %c0_15] : memref<1x8x16xf32, #tpu.memory_space<vmem>>, vector<1x8x16xf32>
    %15 = vector.shape_cast %14 : vector<1x8x16xf32> to vector<8x16xf32>
    %16 = vector.shape_cast %13 : vector<8x16xf32> to vector<1x8x16xf32>
    tpu.vector_store %arg6[%c0_13, %c0_14, %c0_15], %16 {strides = array<i32>} : memref<1x8x16xf32, #tpu.memory_space<vmem>>, vector<1x8x16xf32>,
    return
  }
  func.func @transform_0(%arg0: i32, %arg1: i32) -> (i32, i32, i32) {
    %c0_i32 = arith.constant 0 : i32
    %c0_i32_0 = arith.constant 0 : i32
    return %arg0, %c0_i32, %arg1 : i32, i32, i32
  }
  func.func @transform_1(%arg0: i32, %arg1: i32) -> (i32, i32) {
    %c0_i32 = arith.constant 0 : i32
    %c0_i32_0 = arith.constant 0 : i32
    %c0_i32_1 = arith.constant 0 : i32
    return %c0_i32, %c0_i32_0 : i32, i32
  }
  func.func @transform_2(%arg0: i32, %arg1: i32) -> (i32, i32) {
    %c0_i32 = arith.constant 0 : i32
    %c0_i32_0 = arith.constant 0 : i32
    %c0_i32_1 = arith.constant 0 : i32
    return %c0_i32, %c0_i32_0 : i32, i32
  }
  func.func @transform_3(%arg0: i32, %arg1: i32) -> (i32, i32) {
    %c0_i32 = arith.constant 0 : i32
    %c0_i32_0 = arith.constant 0 : i32
    %c0_i32_1 = arith.constant 0 : i32
    return %c0_i32, %c0_i32_0 : i32, i32
  }
  func.func @transform_4(%arg0: i32, %arg1: i32) -> (i32, i32, i32) {
    %c0_i32 = arith.constant 0 : i32
    %c0_i32_0 = arith.constant 0 : i32
    return %arg0, %c0_i32, %arg1 : i32, i32, i32
  }
}

</mosaic_0001>

<llo_original>
// kernel: mlp_forward.1
$region0: #{mlp_forward.1}
  #allocation0 [shape = 'u32[]', space=smem, size = 0x4, offset = 0x4, fixed_abs, tag = 'smem constant byte address 0x4 - core index']
  #allocation1 [shape = 'u32[72,128]{1,0:T(1,128)}', space=vmem, size = 0x9000, scoped, tag = 'internal scratch']
  %s0 = inlined_call_operand.vmem [shape: f32[2,4,16], index: 0, kind: input, shape index: {}]
  %s1 = inlined_call_operand.vmem [shape: f32[8,4], index: 1, kind: input, shape index: {}]
  %s2 = inlined_call_operand.vmem [shape: f32[16,8], index: 2, kind: input, shape index: {}]
  %s3 = inlined_call_operand.vmem [shape: f32[8,16], index: 3, kind: input, shape index: {}]
  %s4 = inlined_call_operand.hbm [shape: f32[2,8,16], index: 4, kind: output, shape index: {}]
  %s5 = sld [smem:[#allocation0]]
  $region49: #{mlp_forward.1} parent=0
    _
  %s7 = ssub.s32 1, %s5
  %s8 = scalar_select 0, %s7, %s5
  $region1: #{mlp_forward.1} parent=0
    #allocation2 [shape = 'u8[8192]{0}', space=vmem, size = 0x2000, scoped, tag = 'output window, operand 0']
    #allocation3 [shape = 's32[2]{0}', space=sflag, size = 0x8, scoped, tag = 'scoped memory for mlp_forward.1']
    %9 = vsyncpa [#allocation3], 0
    %s10 = scalar_lea.sflag [#allocation3], 1
    %11 = vsyncpa %s10, 0
    loop: start=0, step=1, limit=4
    $region2: #{mlp_forward.1} parent=1 // loop_pre_header
      _
    $region3: #{mlp_forward.1} parent=1 // loop_header
      %s13 = sphi 0, %s17
      %p14 = scmp.ge.s32.totalorder %s13, 4
      %s20 = sphi 0, %s32
      %s21 = sphi 0, %s28
      %s22 = sphi 0, %s20
      %s23 = sphi 0, %s21
      %s24 = sphi 0, %s22
      %s25 = sphi 0, %s23
      %s37 = sphi 0, %s39
      %s40 = sphi 0, %s37
      %s41 = sphi 0, %s40
      %s57 = sphi 0, %s41
      %s61 = sphi 0, %s61
      %s63 = sphi 0, %s61
      %s64 = sphi 0, %s63
      %s78 = sphi 0, %s64
      %s82 = sphi 0, %s82
      %s84 = sphi 0, %s82
      %s85 = sphi 0, %s84
      %s99 = sphi 0, %s85
      %s103 = sphi 0, %s103
      %s105 = sphi 0, %s103
      %s106 = sphi 0, %s105
      %s120 = sphi 0, %s106
      %s128 = sphi 0, %s130
      %s131 = sphi 0, %s128
      %s132 = sphi 0, %s131
      %s148 = sphi 0, %s132
    $region4: #{mlp_forward.1} parent=1 // loop_header_branch
      %16 = sbr.rel (%p14) target = $region8
    $region5: #{mlp_forward.1} parent=1 // loop_body
      %s18 = ssub.s32 %s13, 1
      %s19 = ssub.s32 %s13, 2
      %s26 = sadd.s32 1, %s21
      %p27 = scmp.ge.s32.totalorder %s26, 1
      %s28 = scalar_select %p27, 0, %s26
      %s29 = sadd.s32 1, %s20
      %s30 = scalar_select %p27, %s29, %s20
      %p31 = scmp.ge.s32.totalorder %s30, 2
      %s32 = scalar_select %p31, 0, %s30
      %s33 = ssub.s32 %s20, %s32
      %s34 = ssub.s32 %s21, %s28
      %s35 = sor.u32 %s33, %s34
      %p36 = scmp.eq.s32.totalorder %s35, 0
      %s38 = sadd.s32 %s37, 1
      %s39 = scalar_select %p36, %s37, %s38
      %p42 = pneg %p36
      %p43 = scmp.eq.s32.totalorder %s13, 1
      %p44 = por %p42, %p43
      %p45 = scmp.ne.s32.totalorder %s37, %s40
      %p46 = scmp.eq.s32.totalorder %s13, 0
      %p47 = por %p45, %p46
      %p48 = scmp.ne.s32.totalorder %s37, %s40
      %p49 = scmp.eq.s32.totalorder %s18, 1
      %p50 = por %p48, %p49
      %p51 = scmp.ne.s32.totalorder %s40, %s41
      %p52 = scmp.eq.s32.totalorder %s18, 0
      %p53 = por %p51, %p52
      %p54 = scmp.ne.s32.totalorder %s40, %s41
      %p55 = scmp.eq.s32.totalorder %s19, 1
      %p56 = por %p54, %p55
      %p58 = scmp.ne.s32.totalorder %s41, %s57
      %p59 = scmp.eq.s32.totalorder %s19, 0
      %p60 = por %p58, %p59
      %s62 = sadd.s32 %s61, 1
      %p65 = scmp.eq.s32.totalorder %s13, 1
      %p66 = scmp.ne.s32.totalorder %s61, %s63
      %p67 = scmp.eq.s32.totalorder %s13, 0
      %p68 = por %p66, %p67
      %p69 = scmp.ne.s32.totalorder %s61, %s63
      %p70 = scmp.eq.s32.totalorder %s18, 1
      %p71 = por %p69, %p70
      %p72 = scmp.ne.s32.totalorder %s63, %s64
      %p73 = scmp.eq.s32.totalorder %s18, 0
      %p74 = por %p72, %p73
      %p75 = scmp.ne.s32.totalorder %s63, %s64
      %p76 = scmp.eq.s32.totalorder %s19, 1
      %p77 = por %p75, %p76
      %p79 = scmp.ne.s32.totalorder %s64, %s78
      %p80 = scmp.eq.s32.totalorder %s19, 0
      %p81 = por %p79, %p80
      %s83 = sadd.s32 %s82, 1
      %p86 = scmp.eq.s32.totalorder %s13, 1
      %p87 = scmp.ne.s32.totalorder %s82, %s84
      %p88 = scmp.eq.s32.totalorder %s13, 0
      %p89 = por %p87, %p88
      %p90 = scmp.ne.s32.totalorder %s82, %s84
      %p91 = scmp.eq.s32.totalorder %s18, 1
      %p92 = por %p90, %p91
      %p93 = scmp.ne.s32.totalorder %s84, %s85
      %p94 = scmp.eq.s32.totalorder %s18, 0
      %p95 = por %p93, %p94
      %p96 = scmp.ne.s32.totalorder %s84, %s85
      %p97 = scmp.eq.s32.totalorder %s19, 1
      %p98 = por %p96, %p97
      %p100 = scmp.ne.s32.totalorder %s85, %s99
      %p101 = scmp.eq.s32.totalorder %s19, 0
      %p102 = por %p100, %p101
      %s104 = sadd.s32 %s103, 1
      %p107 = scmp.eq.s32.totalorder %s13, 1
      %p108 = scmp.ne.s32.totalorder %s103, %s105
      %p109 = scmp.eq.s32.totalorder %s13, 0
      %p110 = por %p108, %p109
      %p111 = scmp.ne.s32.totalorder %s103, %s105
      %p112 = scmp.eq.s32.totalorder %s18, 1
      %p113 = por %p111, %p112
      %p114 = scmp.ne.s32.totalorder %s105, %s106
      %p115 = scmp.eq.s32.totalorder %s18, 0
      %p116 = por %p114, %p115
      %p117 = scmp.ne.s32.totalorder %s105, %s106
      %p118 = scmp.eq.s32.totalorder %s19, 1
      %p119 = por %p117, %p118
      %p121 = scmp.ne.s32.totalorder %s106, %s120
      %p122 = scmp.eq.s32.totalorder %s19, 0
      %p123 = por %p121, %p122
      %s124 = ssub.s32 %s20, %s32
      %s125 = ssub.s32 %s21, %s28
      %s126 = sor.u32 %s124, %s125
      %p127 = scmp.eq.s32.totalorder %s126, 0
      %s129 = sadd.s32 %s128, 1
      %s130 = scalar_select %p127, %s128, %s129
      %p133 = pneg %p127
      %p134 = scmp.eq.s32.totalorder %s13, 1
      %p135 = por %p133, %p134
      %p136 = scmp.ne.s32.totalorder %s128, %s131
      %p137 = scmp.eq.s32.totalorder %s13, 0
      %p138 = por %p136, %p137
      %p139 = scmp.ne.s32.totalorder %s128, %s131
      %p140 = scmp.eq.s32.totalorder %s18, 1
      %p141 = por %p139, %p140
      %p142 = scmp.ne.s32.totalorder %s131, %s132
      %p143 = scmp.eq.s32.totalorder %s18, 0
      %p144 = por %p142, %p143
      %p145 = scmp.ne.s32.totalorder %s131, %s132
      %p146 = scmp.eq.s32.totalorder %s19, 1
      %p147 = por %p145, %p146
      %p149 = scmp.ne.s32.totalorder %s132, %s148
      %p150 = scmp.eq.s32.totalorder %s19, 0
      %p151 = por %p149, %p150
      %p152 = scmp.le.s32.totalorder 1, %s13
      %p153 = scmp.lt.s32.totalorder %s13, 3
      %p154 = pnand %p152, %p153
      %p155 = pneg %p154
      // Predicated region
      $region9: #{mlp_forward.1} parent=5 // pred_check
        _
      $region10: #{mlp_forward.1} parent=5 // pred_check_branch
        %157 = sbr.rel (%p154) target = $region12
      $region11: #{mlp_forward.1} parent=5 // pred_region
        %s158 = ssub.s32 %s13, 1
        // Predicated region
        $region13: #{mlp_forward.1} parent=11 // pred_check
          %p159 = pneg %p74
        $region14: #{mlp_forward.1} parent=11 // pred_check_branch
          %161 = sbr.rel (%p159) target = $region16
        $region15: #{mlp_forward.1} parent=11 // pred_region
          _
        $region16: #{mlp_forward.1} parent=11 // pred_fallthru
          _
        // Predicated region
        $region17: #{mlp_forward.1} parent=11 // pred_check
          %p162 = pneg %p95
        $region18: #{mlp_forward.1} parent=11 // pred_check_branch
          %164 = sbr.rel (%p162) target = $region20
        $region19: #{mlp_forward.1} parent=11 // pred_region
          _
        $region20: #{mlp_forward.1} parent=11 // pred_fallthru
          _
        // Predicated region
        $region21: #{mlp_forward.1} parent=11 // pred_check
          %p165 = pneg %p116
        $region22: #{mlp_forward.1} parent=11 // pred_check_branch
          %167 = sbr.rel (%p165) target = $region24
        $region23: #{mlp_forward.1} parent=11 // pred_region
          _
        $region24: #{mlp_forward.1} parent=11 // pred_fallthru
          _
      $region12: #{mlp_forward.1} parent=5 // pred_fallthru
        _
      %p168 = scmp.lt.s32.totalorder %s13, 2
      // Predicated region
      $region25: #{mlp_forward.1} parent=5 // pred_check
        %p169 = pneg %p168
      $region26: #{mlp_forward.1} parent=5 // pred_check_branch
        %171 = sbr.rel (%p169) target = $region28
      $region27: #{mlp_forward.1} parent=5 // pred_region
        // Predicated region
        $region29: #{mlp_forward.1} parent=27 // pred_check
          %p172 = pneg %p47
        $region30: #{mlp_forward.1} parent=27 // pred_check_branch
          %174 = sbr.rel (%p172) target = $region32
        $region31: #{mlp_forward.1} parent=27 // pred_region
          %p175 = scmp.lt.s32.totalorder %s20, 1
          %s176 = scalar_select %p175, %s20, 1
          %p177 = scmp.lt.s32.totalorder %s21, 0
          %s178 = scalar_select %p177, %s21, 0
          %s179 = sadd.s32 %s178, %s176
          %s180 = smul.addr %s179, 4
          %s181 = scalar_lea.vmem %s0, %s180
        $region32: #{mlp_forward.1} parent=27 // pred_fallthru
          _
      $region28: #{mlp_forward.1} parent=5 // pred_fallthru
        _
      %p182 = scmp.le.s32.totalorder 1, %s13
      %p183 = scmp.lt.s32.totalorder %s13, 3
      %p184 = pnand %p182, %p183
      %p185 = pneg %p184
      // Predicated region
      $region33: #{mlp_forward.1} parent=5 // pred_check
        _
      $region34: #{mlp_forward.1} parent=5 // pred_check_branch
        %187 = sbr.rel (%p184) target = $region36
      $region35: #{mlp_forward.1} parent=5 // pred_region
        %s188 = ssub.s32 %s13, 1
        %p189 = scmp.lt.s32.totalorder %s22, 1
        %s190 = scalar_select %p189, %s22, 1
        %p191 = scmp.lt.s32.totalorder %s23, 0
        %s192 = scalar_select %p191, %s23, 0
        %s193 = sadd.s32 %s192, %s190
        %s194 = smul.addr %s193, 4
        %s195 = scalar_lea.vmem %s0, %s194
        %p196 = pneg %p53
        %p197 = pneg %p50
        %p198 = pneg %p74
        %p199 = pneg %p71
        %p200 = pneg %p95
        %p201 = pneg %p92
        %p202 = pneg %p116
        %p203 = pneg %p113
        %p204 = pneg %p144
        %p205 = pneg %p141
        %s206 = sand.u32 %s131, 1
        %s207 = scalar_lea.sflag [#allocation3], %s206
        %s208 = sand.u32 %s131, 1
        %s209 = smul.addr %s208, 8
        %s210 = scalar_lea.vmem [#allocation2], %s209
        %p211 = scmp.lt.s32.totalorder %s22, 1
        %s212 = scalar_select %p211, %s22, 1
        %p213 = scmp.lt.s32.totalorder %s23, 0
        %s214 = scalar_select %p213, %s23, 0
        %s215 = sadd.s32 %s214, %s212
        %s216 = smul.addr %s215, 4
        %s217 = scalar_lea.vmem %s0, %s216
        %v218 = vld [vmem:[%s217] sm:$0xf]
        %v219 = vld [vmem:[%s1] sm:$0xff]
        %vm220 = vcmask 31744
        %v222 = vsel %vm220, %v219, 0
        %vm224 = vcmask 1043456
        %v226 = vsel %vm224, %v218, 0
        %228 = vmatpush.msra.mxu0 0.0
        %229 = vmatpush.msra.mxu0 0.0
        %230 = vmatpush.msra.mxu0 0.0
        %231 = vmatpush.msra.mxu0 0.0
        %232 = vmatpush.msra.mxu0 0.0
        %233 = vmatpush.msra.mxu0 0.0
        %234 = vmatpush.msra.mxu0 0.0
        %235 = vmatpush.msra.mxu0 0.0
        %236 = vmatpush.msra.mxu0 0.0
        %237 = vmatpush.msra.mxu0 0.0
        %238 = vmatpush.msra.mxu0 0.0
        %239 = vmatpush.msra.mxu0 0.0
        %240 = vmatpush.msra.mxu0 0.0
        %241 = vmatpush.msra.mxu0 0.0
        %242 = vmatpush.msra.mxu0 0.0
        %243 = vmatpush.msra.mxu0 %v226
        %244 = vmatmul.f32.gmra.mxu0 %v222
        %v245 = vpop.f32.mrf.mxu0
        %v246 = vadd.f32 0.0, %v245
        %247 = vdwg.mxu0
        %v248 = vmax.f32 %v246, 0.0
        %v249 = vld [vmem:[%s2] sm:$0xff]
        %v250 = vld [vmem:[%s2 + $0x8] sm:$0xff]
        %vm251 = vcmask 64512
        %v253 = vsel %vm251, %v249, 0
        %v256 = vsel %vm251, %v250, 0
        %258 = vmatpush.msra.mxu0 0.0
        %259 = vmatpush.msra.mxu0 0.0
        %260 = vmatpush.msra.mxu0 0.0
        %261 = vmatpush.msra.mxu0 0.0
        %262 = vmatpush.msra.mxu0 0.0
        %263 = vmatpush.msra.mxu0 0.0
        %264 = vmatpush.msra.mxu0 0.0
        %265 = vmatpush.msra.mxu0 0.0
        %266 = vmatpush.msra.mxu0 0.0
        %267 = vmatpush.msra.mxu0 0.0
        %268 = vmatpush.msra.mxu0 0.0
        %269 = vmatpush.msra.mxu0 0.0
        %270 = vmatpush.msra.mxu0 0.0
        %271 = vmatpush.msra.mxu0 0.0
        %272 = vmatpush.msra.mxu0 0.0
        %273 = vmatpush.msra.mxu0 %v248
        %274 = vmatmul.f32.gmra.mxu0 %v253
        %v275 = vpop.f32.mrf.mxu0
        %v276 = vadd.f32 0.0, %v275
        %277 = vmatmul.f32.gmra.mxu0 %v256
        %v278 = vpop.f32.mrf.mxu0
        %v279 = vadd.f32 0.0, %v278
        %280 = vdwg.mxu0
        %v281 = vmax.f32 %v276, 0.0
        %v282 = vmax.f32 %v279, 0.0
        %v283 = vld [vmem:[%s3] sm:$0xff]
        %vm284 = vcmask 130048
        %v286 = vsel %vm284, %v283, 0
        %288 = vmatpush.msra.mxu0 0.0
        %289 = vmatpush.msra.mxu0 0.0
        %290 = vmatpush.msra.mxu0 0.0
        %291 = vmatpush.msra.mxu0 0.0
        %292 = vmatpush.msra.mxu0 0.0
        %293 = vmatpush.msra.mxu0 0.0
        %294 = vmatpush.msra.mxu0 0.0
        %295 = vmatpush.msra.mxu0 0.0
        %296 = vmatpush.msra.mxu0 0.0
        %297 = vmatpush.msra.mxu0 0.0
        %298 = vmatpush.msra.mxu0 0.0
        %299 = vmatpush.msra.mxu0 0.0
        %300 = vmatpush.msra.mxu0 0.0
        %301 = vmatpush.msra.mxu0 0.0
        %302 = vmatpush.msra.mxu0 %v282
        %303 = vmatpush.msra.mxu0 %v281
        %304 = vmatmul.f32.gmra.mxu0 %v286
        %v305 = vpop.f32.mrf.mxu0
        %v306 = vadd.f32 0.0, %v305
        %307 = vdwg.mxu0
        %v308 = vmax.f32 %v306, 0.0
        %309 = vst.msk [vmem:[%s210] sm:$0xff] %vm284, %v308
        %s310 = sand.u32 %s131, 1
        %s311 = scalar_lea.sflag [#allocation3], %s310
        %s312 = sand.u32 %s131, 1
        %s313 = smul.addr %s312, 8
        %s314 = scalar_lea.vmem [#allocation2], %s313
        // Predicated region
        $region37: #{mlp_forward.1} parent=35 // pred_check
          %p315 = pneg %p141
        $region38: #{mlp_forward.1} parent=35 // pred_check_branch
          %317 = sbr.rel (%p315) target = $region40
        $region39: #{mlp_forward.1} parent=35 // pred_region
          %319 = vsyncadd %s311, 0
          %s320 = sadd.s32 %s23, %s22
          %s321 = smul.addr %s320, 8
          %s322 = scalar_lea.hbm %s4, %s321
          %s324 = sshll.u32 %s314, 4
          %s325 = int_to_ptr.vmem [resolvable:$true] %s324
          %s326 = sshll.u32 %s322, 4
          %s327 = int_to_ptr.hbm [resolvable:$true] %s326
          %329 = dma.vmem_to_hbm [thread:$0]  %s325, 128, %s327, %s311
        $region40: #{mlp_forward.1} parent=35 // pred_fallthru
          _
      $region36: #{mlp_forward.1} parent=5 // pred_fallthru
        _
      %p330 = scmp.le.s32.totalorder 2, %s13
      // Predicated region
      $region41: #{mlp_forward.1} parent=5 // pred_check
        %p331 = pneg %p330
      $region42: #{mlp_forward.1} parent=5 // pred_check_branch
        %333 = sbr.rel (%p331) target = $region44
      $region43: #{mlp_forward.1} parent=5 // pred_region
        %s334 = ssub.s32 %s13, 2
        // Predicated region
        $region45: #{mlp_forward.1} parent=43 // pred_check
          %p335 = pneg %p147
        $region46: #{mlp_forward.1} parent=43 // pred_check_branch
          %337 = sbr.rel (%p335) target = $region48
        $region47: #{mlp_forward.1} parent=43 // pred_region
          %s338 = sand.u32 %s132, 1
          %s339 = scalar_lea.sflag [#allocation3], %s338
          %s340 = sand.u32 %s132, 1
          %s341 = smul.addr %s340, 8
          %s342 = scalar_lea.vmem [#allocation2], %s341
          %344 = dma.done %s339, 128
        $region48: #{mlp_forward.1} parent=43 // pred_fallthru
          _
      $region44: #{mlp_forward.1} parent=5 // pred_fallthru
        _
    $region6: #{mlp_forward.1} parent=1 // loop_footer
      %s17 = sadd.s32 1, %s13
    $region7: #{mlp_forward.1} parent=1 // loop_footer_branch
      %12 = sbr.rel target = $region3
    $region8: #{mlp_forward.1} parent=1 // loop_exit
      _
    %345 = vsyncpa [#allocation3], 1
    %s346 = scalar_lea.sflag [#allocation3], 1
    %347 = vsyncpa %s346, 1

</llo_original>
